<compile_context>
chip_gen: v7x
topology: tpu7x:2x2x1
jax: 0.10.0
libtpu: 0.0.40
codegen_flags: <defaults>
</compile_context>

<pallas_src>
import functools

import jax
import jax.numpy as jnp
from jax.experimental import pallas as pl
from jax.experimental.pallas import tpu as pltpu


def _round_up(n, m):
    return ((n + m - 1) // m) * m


def _pick_tile(n, candidates):
    """Largest candidate that divides n; else the full dim (always legal)."""
    for t in candidates:
        if t <= n and n % t == 0:
            return t
    return n


def _self_attention_kernel(x_ref, w1_ref, b1_ref, w2_ref, b2_ref, o_ref,
                           acc_ref, *, inv_c):
    # x_ref : (TB, TC, hw)        f32   -- one batch/channel tile of x
    # w1_ref: (hw, hid_pad)       f32   -- resident (constant index_map)
    # b1_ref: (1, hid_pad)        f32
    # w2_ref: (hid_pad, hw_pad)   f32
    # b2_ref: (1, hw_pad)         f32
    # o_ref : (TB, hw_pad)        f32   -- written once, at the last c-step
    # acc_ref: (TB, hw)           f32   -- running channel-sum accumulator
    k = pl.program_id(1)

    @pl.when(k == 0)
    def _():
        acc_ref[...] = jnp.zeros_like(acc_ref)

    # Accumulate the channel sum for this c-tile into the resident scratch.
    acc_ref[...] += jnp.sum(x_ref[...].astype(jnp.float32), axis=1)

    @pl.when(k == pl.num_programs(1) - 1)
    def _():
        # Finish the mean, then run the FC epilogue once per batch tile.
        pooled = acc_ref[...] * inv_c                                  # (TB, hw)
        h1 = jnp.dot(pooled, w1_ref[...],
                     preferred_element_type=jnp.float32)               # (TB, hid_pad)
        h1 = jnp.maximum(h1 + b1_ref[...], 0.0)
        h2 = jnp.dot(h1, w2_ref[...],
                     preferred_element_type=jnp.float32)               # (TB, hw_pad)
        h2 = h2 + b2_ref[...]
        o_ref[...] = jax.nn.sigmoid(h2)


def prepare_self_attention_params(w1, b1, w2, b2):
    """One-time param prep (hoisted out of the per-call path).

    w1: (hid, hw), b1: (hid,), w2: (hw, hid), b2: (hw,)  [nn.Linear layout]
    Returns pre-transposed, zero-padded (lane-dense) f32 params:
      w1t: (hw, hid_pad), b1p: (1, hid_pad), w2t: (hid_pad, hw_pad), b2p: (1, hw_pad)
    Zero padding is exact: padded hidden units give relu(0)=0 and padded w2 rows
    contribute 0; padded output lanes are sliced off in the wrapper.
    """
    hid, hw = w1.shape
    hid_pad = _round_up(hid, 128)
    hw_pad = _round_up(hw, 128)

    w1t = jnp.zeros((hw, hid_pad), jnp.float32)
    w1t = w1t.at[:, :hid].set(jnp.transpose(w1).astype(jnp.float32))
    b1p = jnp.zeros((1, hid_pad), jnp.float32)
    b1p = b1p.at[:, :hid].set(b1.astype(jnp.float32))
    w2t = jnp.zeros((hid_pad, hw_pad), jnp.float32)
    w2t = w2t.at[:hid, :hw].set(jnp.transpose(w2).astype(jnp.float32))
    b2p = jnp.zeros((1, hw_pad), jnp.float32)
    b2p = b2p.at[:, :hw].set(b2.astype(jnp.float32))
    return w1t, b1p, w2t, b2p


def self_attention_forward(x, params):
    """x: (b, c, h, w); params: output of prepare_self_attention_params."""
    w1t, b1p, w2t, b2p = params
    b, c, h, w = x.shape
    hw = h * w
    assert w1t.shape[0] == hw, "param feature_size^2 must match h*w"
    hid_pad = w1t.shape[1]
    hw_pad = w2t.shape[1]

    x3 = x.reshape(b, c, hw)
    if x3.dtype != jnp.float32:
        # TODO(synk): optionally stream x as bf16 (accumulate in f32) to halve
        # HBM traffic; kept f32 here to preserve tight numerics.
        x3 = x3.astype(jnp.float32)

    # --- tile selection -----------------------------------------------------
    tb = _pick_tile(b, (256, 128, 64, 32, 16, 8))   # batch tile (parallel axis)
    tc = _pick_tile(c, (64, 32, 16, 8))             # channel tile (reduction)

    # Keep the double-buffered x tiles inside a conservative budget so the
    # same tiling survives v5e's 16 MiB scoped default and v7x's 64 MiB VMEM.
    x_budget = 16 * 1024 * 1024

    def _x_tile_bytes(tb_, tc_):
        return 2 * tb_ * tc_ * hw * 4  # double-buffered f32 tiles

    while _x_tile_bytes(tb, tc) > x_budget and tc % 16 == 0:
        tc //= 2
    while _x_tile_bytes(tb, tc) > x_budget and tb % 16 == 0:
        tb //= 2

    grid = (b // tb, c // tc)
    inv_c = float(1.0 / c)

    out = pl.pallas_call(
        functools.partial(_self_attention_kernel, inv_c=inv_c),
        out_shape=jax.ShapeDtypeStruct((b, hw_pad), jnp.float32),
        grid_spec=pltpu.PrefetchScalarGridSpec(
            num_scalar_prefetch=0,
            grid=grid,
            in_specs=[
                # x: pipelined (TB, TC, hw) tiles.
                pl.BlockSpec((tb, tc, hw), lambda i, k: (i, k, 0)),
                # Weights / biases: constant block index -> DMA'd once, resident.
                pl.BlockSpec((hw, hid_pad), lambda i, k: (0, 0)),
                pl.BlockSpec((1, hid_pad), lambda i, k: (0, 0)),
                pl.BlockSpec((hid_pad, hw_pad), lambda i, k: (0, 0)),
                pl.BlockSpec((1, hw_pad), lambda i, k: (0, 0)),
            ],
            out_specs=pl.BlockSpec((tb, hw_pad), lambda i, k: (i, 0)),
            scratch_shapes=[pltpu.VMEM((tb, hw), jnp.float32)],
        ),
        compiler_params=pltpu.CompilerParams(
            dimension_semantics=("parallel", "arbitrary"),
            vmem_limit_bytes=32 * 1024 * 1024,
        ),
    )(x3, w1t, b1p, w2t, b2p)

    return out[:, :hw].reshape(b, 1, h, w)


if __name__ == "__main__":
    # Small, consistent shapes: feature_size = h = w = 16 -> hw = 256, hidden = 32.
    feature_size = 16
    b, c, h, w = 2, 4, feature_size, feature_size
    hw = h * w
    hid = hw // 8

    key = jax.random.PRNGKey(0)
    k_x, k_w1, k_b1, k_w2, k_b2 = jax.random.split(key, 5)

    x = jax.random.normal(k_x, (b, c, h, w), dtype=jnp.float32)
    # nn.Linear-style parameter shapes: weight (out, in), bias (out,)
    w1 = jax.random.normal(k_w1, (hid, hw), dtype=jnp.float32) * 0.05
    b1 = jax.random.normal(k_b1, (hid,), dtype=jnp.float32) * 0.05
    w2 = jax.random.normal(k_w2, (hw, hid), dtype=jnp.float32) * 0.05
    b2 = jax.random.normal(k_b2, (hw,), dtype=jnp.float32) * 0.05

    # Param prep (transpose + lane padding) is done once, outside the hot path.
    params = prepare_self_attention_params(w1, b1, w2, b2)

    out = self_attention_forward(x, params)
    out = jax.block_until_ready(out)

    # Reference check in plain JAX (same math as the PyTorch module).
    pooled = jnp.mean(x, axis=1).reshape(b, hw)
    ref = jax.nn.sigmoid(
        jnp.maximum(pooled @ w1.T + b1, 0.0) @ w2.T + b2
    ).reshape(b, 1, h, w)
    assert out.shape == (b, 1, h, w)
    assert jnp.allclose(out, ref, atol=1e-5, rtol=1e-5)

    print("KERNEL_OK")
</pallas_src>

<mosaic_0001>
module attributes {stable_mosaic.version = 11 : i64} {
  func.func @_self_attention_kernel(%arg0: i32, %arg1: i32, %arg2: memref<2x4x256xf32, #tpu.memory_space<vmem>>, %arg3: memref<256x128xf32, #tpu.memory_space<vmem>>, %arg4: memref<1x128xf32, #tpu.memory_space<vmem>>, %arg5: memref<128x256xf32, #tpu.memory_space<vmem>>, %arg6: memref<1x256xf32, #tpu.memory_space<vmem>>, %arg7: memref<2x256xf32, #tpu.memory_space<vmem>>, %arg8: memref<2x256xf32, #tpu.memory_space<vmem>>) attributes {dimension_semantics = [#tpu.dimension_semantics<parallel>, #tpu.dimension_semantics<arbitrary>], iteration_bounds = array<i64: 1, 1>, scalar_prefetch = 0 : i64, scratch_operands = 1 : i64, tpu.core_type = #tpu.core_type<tc>, window_params = [{transform_indices = @transform_0, window_bounds = array<i64: 2, 4, 256>}, {pipeline_mode = #tpu.pipeline_mode<synchronous>, transform_indices = @transform_1, window_bounds = array<i64: 256, 128>}, {pipeline_mode = #tpu.pipeline_mode<synchronous>, transform_indices = @transform_2, window_bounds = array<i64: 1, 128>}, {pipeline_mode = #tpu.pipeline_mode<synchronous>, transform_indices = @transform_3, window_bounds = array<i64: 128, 256>}, {pipeline_mode = #tpu.pipeline_mode<synchronous>, transform_indices = @transform_4, window_bounds = array<i64: 1, 256>}, {transform_indices = @transform_5, window_bounds = array<i64: 2, 256>}]} {
    %c0_i32 = arith.constant 0 : i32
    %0 = arith.cmpi eq, %arg1, %c0_i32 : i32
    %1 = arith.extui %0 : i1 to i32
    %c0_i32_0 = arith.constant 0 : i32
    %2 = arith.cmpi ne, %1, %c0_i32_0 : i32
    scf.if %2 {
      %cst_9 = arith.constant 0.000000e+00 : f32
      %11 = vector.broadcast %cst_9 : f32 to vector<2x256xf32>
      %c0_10 = arith.constant 0 : index
      %c0_11 = arith.constant 0 : index
      %12 = vector.load %arg8[%c0_10, %c0_11] : memref<2x256xf32, #tpu.memory_space<vmem>>, vector<2x256xf32>
      tpu.vector_store %arg8[%c0_10, %c0_11], %11 {strides = array<i32>} : memref<2x256xf32, #tpu.memory_space<vmem>>, vector<2x256xf32>,
    } else {
    }
    %c0 = arith.constant 0 : index
    %c0_1 = arith.constant 0 : index
    %3 = vector.load %arg8[%c0, %c0_1] : memref<2x256xf32, #tpu.memory_space<vmem>>, vector<2x256xf32>
    %c0_2 = arith.constant 0 : index
    %c0_3 = arith.constant 0 : index
    %c0_4 = arith.constant 0 : index
    %4 = vector.load %arg2[%c0_2, %c0_3, %c0_4] : memref<2x4x256xf32, #tpu.memory_space<vmem>>, vector<2x4x256xf32>
    %cst = arith.constant dense<0.000000e+00> : vector<2x256xf32>
    %5 = vector.multi_reduction <add>, %4, %cst [1] : vector<2x4x256xf32> to vector<2x256xf32>
    %6 = arith.addf %3, %5 : vector<2x256xf32>
    %c0_5 = arith.constant 0 : index
    %c0_6 = arith.constant 0 : index
    %7 = vector.load %arg8[%c0_5, %c0_6] : memref<2x256xf32, #tpu.memory_space<vmem>>, vector<2x256xf32>
    tpu.vector_store %arg8[%c0_5, %c0_6], %6 {strides = array<i32>} : memref<2x256xf32, #tpu.memory_space<vmem>>, vector<2x256xf32>,
    %c0_i32_7 = arith.constant 0 : i32
    %8 = arith.cmpi eq, %arg1, %c0_i32_7 : i32
    %9 = arith.extui %8 : i1 to i32
    %c0_i32_8 = arith.constant 0 : i32
    %10 = arith.cmpi ne, %9, %c0_i32_8 : i32
    scf.if %10 {
      %c0_9 = arith.constant 0 : index
      %c0_10 = arith.constant 0 : index
      %11 = vector.load %arg8[%c0_9, %c0_10] : memref<2x256xf32, #tpu.memory_space<vmem>>, vector<2x256xf32>
      %cst_11 = arith.constant 2.500000e-01 : f32
      %12 = vector.broadcast %cst_11 : f32 to vector<2x256xf32>
      %13 = arith.mulf %11, %12 : vector<2x256xf32>
      %c0_12 = arith.constant 0 : index
      %c0_13 = arith.constant 0 : index
      %14 = vector.load %arg3[%c0_12, %c0_13] : memref<256x128xf32, #tpu.memory_space<vmem>>, vector<256x128xf32>
      %cst_14 = arith.constant dense<0.000000e+00> : vector<2x128xf32>
      %15 = tpu.matmul %13, %14, %cst_14 {dimension_numbers = #tpu.dot_dimension_numbers<[1], [0], [0], [1], [0, 0, 1, 1], [], []>} : vector<2x256xf32>, vector<256x128xf32>, vector<2x128xf32> -> vector<2x128xf32>
      %c0_15 = arith.constant 0 : index
      %c0_16 = arith.constant 0 : index
      %16 = vector.load %arg4[%c0_15, %c0_16] : memref<1x128xf32, #tpu.memory_space<vmem>>, vector<1x128xf32>
      %17 = vector.broadcast %16 : vector<1x128xf32> to vector<2x128xf32>
      %18 = arith.addf %15, %17 : vector<2x128xf32>
      %cst_17 = arith.constant 0.000000e+00 : f32
      %19 = vector.broadcast %cst_17 : f32 to vector<2x128xf32>
      %20 = arith.maximumf %18, %19 : vector<2x128xf32>
      %c0_18 = arith.constant 0 : index
      %c0_19 = arith.constant 0 : index
      %21 = vector.load %arg5[%c0_18, %c0_19] : memref<128x256xf32, #tpu.memory_space<vmem>>, vector<128x256xf32>
      %cst_20 = arith.constant dense<0.000000e+00> : vector<2x256xf32>
      %22 = tpu.matmul %20, %21, %cst_20 {dimension_numbers = #tpu.dot_dimension_numbers<[1], [0], [0], [1], [0, 0, 1, 1], [], []>} : vector<2x128xf32>, vector<128x256xf32>, vector<2x256xf32> -> vector<2x256xf32>
      %c0_21 = arith.constant 0 : index
      %c0_22 = arith.constant 0 : index
      %23 = vector.load %arg6[%c0_21, %c0_22] : memref<1x256xf32, #tpu.memory_space<vmem>>, vector<1x256xf32>
      %24 = vector.broadcast %23 : vector<1x256xf32> to vector<2x256xf32>
      %25 = arith.addf %22, %24 : vector<2x256xf32>
      %26 = arith.negf %25 : vector<2x256xf32>
      %27 = math.exp %26 : vector<2x256xf32>
      %cst_23 = arith.constant 1.000000e+00 : f32
      %28 = vector.broadcast %cst_23 : f32 to vector<2x256xf32>
      %29 = arith.addf %28, %27 : vector<2x256xf32>
      %30 = arith.divf %28, %29 : vector<2x256xf32>
      %c0_24 = arith.constant 0 : index
      %c0_25 = arith.constant 0 : index
      %31 = vector.load %arg7[%c0_24, %c0_25] : memref<2x256xf32, #tpu.memory_space<vmem>>, vector<2x256xf32>
      tpu.vector_store %arg7[%c0_24, %c0_25], %30 {strides = array<i32>} : memref<2x256xf32, #tpu.memory_space<vmem>>, vector<2x256xf32>,
    } else {
    }
    return
  }
  func.func @transform_0(%arg0: i32, %arg1: i32) -> (i32, i32, i32) {
    %c0_i32 = arith.constant 0 : i32
    %c0_i32_0 = arith.constant 0 : i32
    return %arg0, %arg1, %c0_i32 : i32, i32, i32
  }
  func.func @transform_1(%arg0: i32, %arg1: i32) -> (i32, i32) {
    %c0_i32 = arith.constant 0 : i32
    %c0_i32_0 = arith.constant 0 : i32
    %c0_i32_1 = arith.constant 0 : i32
    return %c0_i32, %c0_i32_0 : i32, i32
  }
  func.func @transform_2(%arg0: i32, %arg1: i32) -> (i32, i32) {
    %c0_i32 = arith.constant 0 : i32
    %c0_i32_0 = arith.constant 0 : i32
    %c0_i32_1 = arith.constant 0 : i32
    return %c0_i32, %c0_i32_0 : i32, i32
  }
  func.func @transform_3(%arg0: i32, %arg1: i32) -> (i32, i32) {
    %c0_i32 = arith.constant 0 : i32
    %c0_i32_0 = arith.constant 0 : i32
    %c0_i32_1 = arith.constant 0 : i32
    return %c0_i32, %c0_i32_0 : i32, i32
  }
  func.func @transform_4(%arg0: i32, %arg1: i32) -> (i32, i32) {
    %c0_i32 = arith.constant 0 : i32
    %c0_i32_0 = arith.constant 0 : i32
    %c0_i32_1 = arith.constant 0 : i32
    return %c0_i32, %c0_i32_0 : i32, i32
  }
  func.func @transform_5(%arg0: i32, %arg1: i32) -> (i32, i32) {
    %c0_i32 = arith.constant 0 : i32
    %c0_i32_0 = arith.constant 0 : i32
    return %arg0, %c0_i32 : i32, i32
  }
}

</mosaic_0001>

<llo_original>
// kernel: tpu_custom_call.1
$region0: #{tpu_custom_call.1}
  #allocation0 [shape = 'u32[]', space=smem, size = 0x4, offset = 0x4, fixed_abs, tag = 'smem constant byte address 0x4 - core index']
  #allocation1 [shape = 'u32[144,128]{1,0:T(1,128)}', space=vmem, size = 0x12000, scoped, tag = 'internal scratch']
  #allocation2 [shape = 'f32[2,256]{1,0:T(2,128)}', space=vmem, size = 0x800, scoped, tag = 'scratch operand']
  %s0 = inlined_call_operand.hbm [shape: f32[2,4,256], index: 0, kind: input, shape index: {}]
  %s1 = inlined_call_operand.hbm [shape: f32[256,128], index: 1, kind: input, shape index: {}]
  %s2 = inlined_call_operand.vmem [shape: f32[1,128], index: 2, kind: input, shape index: {}]
  %s3 = inlined_call_operand.hbm [shape: f32[128,256], index: 3, kind: input, shape index: {}]
  %s4 = inlined_call_operand.vmem [shape: f32[1,256], index: 4, kind: input, shape index: {}]
  %s5 = inlined_call_operand.hbm [shape: f32[2,256], index: 5, kind: output, shape index: {}]
  %s6 = sld [smem:[#allocation0]]
  $region50: #{tpu_custom_call.1} parent=0
    _
  %s8 = ssub.s32 1, %s6
  %s9 = scalar_select 0, %s8, %s6
  $region1: #{tpu_custom_call.1} parent=0
    #allocation3 [shape = 'u8[8192]{0}', space=vmem, size = 0x2000, scoped, tag = 'input window, operand 0, single buffered']
    #allocation4 [shape = 's32[1]{0}', space=sflag, size = 0x4, scoped, tag = 'scoped memory for tpu_custom_call.1']
    #allocation5 [shape = 's32[1]{0}', space=sflag, size = 0x4, scoped, tag = 'scoped memory for tpu_custom_call.1']
    #allocation6 [shape = 'u8[131072]{0}', space=vmem, size = 0x20000, scoped, tag = 'input window, operand 1, single buffered']
    #allocation7 [shape = 's32[1]{0}', space=sflag, size = 0x4, scoped, tag = 'scoped memory for tpu_custom_call.1']
    #allocation8 [shape = 'u8[131072]{0}', space=vmem, size = 0x20000, scoped, tag = 'input window, operand 3, single buffered']
    #allocation9 [shape = 'u8[2048]{0}', space=vmem, size = 0x800, scoped, tag = 'output window, operand 0, single buffered']
    %10 = vsyncpa [#allocation4], 0
    %11 = vsyncpa [#allocation7], 0
    %12 = vsyncpa [#allocation5], 0
    // Predicated region
    $region2: #{tpu_custom_call.1} parent=1 // pred_check
      _
    $region3: #{tpu_custom_call.1} parent=1 // pred_check_branch
      %14 = sbr.rel (0) target = $region5
    $region4: #{tpu_custom_call.1} parent=1 // pred_region
      %s16 = ssub.s32 256, 256
      %17 = vsyncadd [#allocation4], %s16
      %s18 = sshll.u32 [#allocation3], 4
      %s19 = int_to_ptr.vmem [resolvable:$true] %s18
      %24 = dma.hbm_to_vmem [thread:$0]  %s0, 256, %s19, [#allocation4], 128, 128, 8
    $region5: #{tpu_custom_call.1} parent=1 // pred_fallthru
      _
    // Predicated region
    $region6: #{tpu_custom_call.1} parent=1 // pred_check
      _
    $region7: #{tpu_custom_call.1} parent=1 // pred_check_branch
      %26 = sbr.rel (0) target = $region9
    $region8: #{tpu_custom_call.1} parent=1 // pred_region
      %s28 = ssub.s32 4096, 4096
      %29 = vsyncadd [#allocation7], %s28
      %s30 = sshll.u32 [#allocation6], 4
      %s31 = int_to_ptr.vmem [resolvable:$true] %s30
      %36 = dma.hbm_to_vmem [thread:$0]  %s1, 4096, %s31, [#allocation7], 128, 128, 8
    $region9: #{tpu_custom_call.1} parent=1 // pred_fallthru
      _
    // Predicated region
    $region10: #{tpu_custom_call.1} parent=1 // pred_check
      _
    $region11: #{tpu_custom_call.1} parent=1 // pred_check_branch
      %38 = sbr.rel (0) target = $region13
    $region12: #{tpu_custom_call.1} parent=1 // pred_region
      _
    $region13: #{tpu_custom_call.1} parent=1 // pred_fallthru
      _
    // Predicated region
    $region14: #{tpu_custom_call.1} parent=1 // pred_check
      _
    $region15: #{tpu_custom_call.1} parent=1 // pred_check_branch
      %40 = sbr.rel (0) target = $region17
    $region16: #{tpu_custom_call.1} parent=1 // pred_region
      %s42 = ssub.s32 4096, 4096
      %43 = vsyncadd [#allocation7], %s42
      %s44 = sshll.u32 [#allocation8], 4
      %s45 = int_to_ptr.vmem [resolvable:$true] %s44
      %50 = dma.hbm_to_vmem [thread:$0]  %s3, 4096, %s45, [#allocation7], 256, 256, 16
    $region17: #{tpu_custom_call.1} parent=1 // pred_fallthru
      _
    // Predicated region
    $region18: #{tpu_custom_call.1} parent=1 // pred_check
      _
    $region19: #{tpu_custom_call.1} parent=1 // pred_check_branch
      %52 = sbr.rel (0) target = $region21
    $region20: #{tpu_custom_call.1} parent=1 // pred_region
      _
    $region21: #{tpu_custom_call.1} parent=1 // pred_fallthru
      _
    // Predicated region
    $region22: #{tpu_custom_call.1} parent=1 // pred_check
      _
    $region23: #{tpu_custom_call.1} parent=1 // pred_check_branch
      %54 = sbr.rel (0) target = $region25
    $region24: #{tpu_custom_call.1} parent=1 // pred_region
      %55 = dma.done [#allocation4], 256
    $region25: #{tpu_custom_call.1} parent=1 // pred_fallthru
      _
    // Predicated region
    $region26: #{tpu_custom_call.1} parent=1 // pred_check
      _
    $region27: #{tpu_custom_call.1} parent=1 // pred_check_branch
      %57 = sbr.rel (0) target = $region29
    $region28: #{tpu_custom_call.1} parent=1 // pred_region
      %58 = dma.done [#allocation7], 4096
    $region29: #{tpu_custom_call.1} parent=1 // pred_fallthru
      _
    // Predicated region
    $region30: #{tpu_custom_call.1} parent=1 // pred_check
      _
    $region31: #{tpu_custom_call.1} parent=1 // pred_check_branch
      %60 = sbr.rel (0) target = $region33
    $region32: #{tpu_custom_call.1} parent=1 // pred_region
      %61 = dma.done [#allocation7], 4096
    $region33: #{tpu_custom_call.1} parent=1 // pred_fallthru
      _
    %p62 = scmp.eq.s32.totalorder 0, 0
    // Predicated region
    $region34: #{tpu_custom_call.1} parent=1 // pred_check
      %p63 = pneg %p62
    $region35: #{tpu_custom_call.1} parent=1 // pred_check_branch
      %65 = sbr.rel (%p63) target = $region37
    $region36: #{tpu_custom_call.1} parent=1 // pred_region
      %66 = vst [vmem:[#allocation2] sm:$0xf] 0.0
    $region37: #{tpu_custom_call.1} parent=1 // pred_fallthru
      _
    %v67 = vld [vmem:[#allocation2] sm:$0xf]
    %v68 = vld [vmem:[#allocation3] sm:$0xff]
    %v69 = vld [vmem:[#allocation3 + $0x8] sm:$0xff]
    %v72 = vcombine.high %v68, %v68
    %v73 = vcombine.high %v69, %v69
    %vm76 = vcmask 1043456
    %v77 = vsel %vm76, %v68, 0.0
    %v78 = vrot.slane %v77, 4
    %v79 = vadd.f32 %v77, %v78
    %v80 = vrot.slane %v79, 2
    %v81 = vadd.f32 %v79, %v80
    %v82 = vrot.slane %v81, 1
    %v83 = vadd.f32 %v81, %v82
    %v84 = vsel %vm76, %v72, 0.0
    %v85 = vrot.slane %v84, 4
    %v86 = vadd.f32 %v84, %v85
    %v87 = vrot.slane %v86, 2
    %v88 = vadd.f32 %v86, %v87
    %v89 = vrot.slane %v88, 1
    %v90 = vadd.f32 %v88, %v89
    %v91 = vsel %vm76, %v69, 0.0
    %v92 = vrot.slane %v91, 4
    %v93 = vadd.f32 %v91, %v92
    %v94 = vrot.slane %v93, 2
    %v95 = vadd.f32 %v93, %v94
    %v96 = vrot.slane %v95, 1
    %v97 = vadd.f32 %v95, %v96
    %v98 = vsel %vm76, %v73, 0.0
    %v99 = vrot.slane %v98, 4
    %v100 = vadd.f32 %v98, %v99
    %v101 = vrot.slane %v100, 2
    %v102 = vadd.f32 %v100, %v101
    %v103 = vrot.slane %v102, 1
    %v104 = vadd.f32 %v102, %v103
    %v109 = vcombine.low %v83, %v90
    %v111 = vunpack.c.l.s4 1983009808
    %v112 = vunpack.c.0.s8 %v111
    %v113 = vlaneseq
    %v114 = vshrl.u32 %v113, 7
    %v115 = vsub.s32 %v112, %v114
    %v116 = vrot.slane %v109, %v115
    %v117 = vcombine.low %v97, %v104
    %v119 = vunpack.c.l.s4 1983009808
    %v120 = vunpack.c.0.s8 %v119
    %v121 = vlaneseq
    %v122 = vshrl.u32 %v121, 7
    %v123 = vsub.s32 %v120, %v122
    %v124 = vrot.slane %v117, %v123
    %vm125 = vcmask 1044484
    %v126 = vsel %vm125, %v116, %v116
    %vm127 = vcmask 1046534
    %v128 = vsel %vm127, %v116, %v126
    %v129 = vrot.slane %v124, 7
    %vm130 = vcmask 1041409
    %v131 = vsel %vm130, %v129, %v128
    %vm132 = vcmask 1043459
    %v133 = vsel %vm132, %v129, %v131
    %vm134 = vcmask 1045509
    %v135 = vsel %vm134, %v129, %v133
    %vm136 = vcmask 1047559
    %v137 = vsel %vm136, %v129, %v135
    %v139 = vadd.f32 %v67, %v137
    %140 = vst [vmem:[#allocation2] sm:$0xf] %v139
    // Predicated region
    $region38: #{tpu_custom_call.1} parent=1 // pred_check
      %p141 = pneg %p62
    $region39: #{tpu_custom_call.1} parent=1 // pred_check_branch
      %143 = sbr.rel (%p141) target = $region41
    $region40: #{tpu_custom_call.1} parent=1 // pred_region
      %v144 = vld [vmem:[#allocation2] sm:$0xf]
      %v145 = vmul.f32 %v144, 0.25
      %v146 = vld [vmem:[#allocation6] sm:$0xff]
      %v147 = vld [vmem:[#allocation6 + $0x8] sm:$0xff]
      %v148 = vld [vmem:[#allocation6 + $0x10] sm:$0xff]
      %v149 = vld [vmem:[#allocation6 + $0x18] sm:$0xff]
      %v150 = vld [vmem:[#allocation6 + $0x20] sm:$0xff]
      %v151 = vld [vmem:[#allocation6 + $0x28] sm:$0xff]
      %v152 = vld [vmem:[#allocation6 + $0x30] sm:$0xff]
      %v153 = vld [vmem:[#allocation6 + $0x38] sm:$0xff]
      %v154 = vld [vmem:[#allocation6 + $0x40] sm:$0xff]
      %v155 = vld [vmem:[#allocation6 + $0x48] sm:$0xff]
      %v156 = vld [vmem:[#allocation6 + $0x50] sm:$0xff]
      %v157 = vld [vmem:[#allocation6 + $0x58] sm:$0xff]
      %v158 = vld [vmem:[#allocation6 + $0x60] sm:$0xff]
      %v159 = vld [vmem:[#allocation6 + $0x68] sm:$0xff]
      %v160 = vld [vmem:[#allocation6 + $0x70] sm:$0xff]
      %v161 = vld [vmem:[#allocation6 + $0x78] sm:$0xff]
      %v162 = vld [vmem:[#allocation6 + $0x80] sm:$0xff]
      %v163 = vld [vmem:[#allocation6 + $0x88] sm:$0xff]
      %v164 = vld [vmem:[#allocation6 + $0x90] sm:$0xff]
      %v165 = vld [vmem:[#allocation6 + $0x98] sm:$0xff]
      %v166 = vld [vmem:[#allocation6 + $0xa0] sm:$0xff]
      %v167 = vld [vmem:[#allocation6 + $0xa8] sm:$0xff]
      %v168 = vld [vmem:[#allocation6 + $0xb0] sm:$0xff]
      %v169 = vld [vmem:[#allocation6 + $0xb8] sm:$0xff]
      %v170 = vld [vmem:[#allocation6 + $0xc0] sm:$0xff]
      %v171 = vld [vmem:[#allocation6 + $0xc8] sm:$0xff]
      %v172 = vld [vmem:[#allocation6 + $0xd0] sm:$0xff]
      %v173 = vld [vmem:[#allocation6 + $0xd8] sm:$0xff]
      %v174 = vld [vmem:[#allocation6 + $0xe0] sm:$0xff]
      %v175 = vld [vmem:[#allocation6 + $0xe8] sm:$0xff]
      %v176 = vld [vmem:[#allocation6 + $0xf0] sm:$0xff]
      %v177 = vld [vmem:[#allocation6 + $0xf8] sm:$0xff]
      %v178 = vld [vmem:[%s2] sm:$0x1]
      %v180 = vlaneseq
      %v181 = vshrl.u32 %v180, 7
      %v182 = vsub.s32 0, %v181
      %v183 = vrot.slane %v178, %v182
      %v187 = vunpack.c.l.s4 1983009808
      %v188 = vunpack.c.0.s8 %v187
      %v189 = vlaneseq
      %v190 = vshrl.u32 %v189, 7
      %v191 = vsub.s32 %v188, %v190
      %v192 = vrot.slane %v145, %v191
      %v193 = vcombine.high %v192, %v192
      %196 = vmatprep.subr.mxu0 0.0
      %197 = vmatpush1.msra.mxu0 %v146
      %198 = vmatprep.subr.mxu0 0.0
      %199 = vmatpush1.msra.mxu0 %v147
      %200 = vmatprep.subr.mxu0 0.0
      %201 = vmatpush1.msra.mxu0 %v148
      %202 = vmatprep.subr.mxu0 0.0
      %203 = vmatpush1.msra.mxu0 %v149
      %204 = vmatprep.subr.mxu0 0.0
      %205 = vmatpush1.msra.mxu0 %v150
      %206 = vmatprep.subr.mxu0 0.0
      %207 = vmatpush1.msra.mxu0 %v151
      %208 = vmatprep.subr.mxu0 0.0
      %209 = vmatpush1.msra.mxu0 %v152
      %210 = vmatprep.subr.mxu0 0.0
      %211 = vmatpush1.msra.mxu0 %v153
      %212 = vmatprep.subr.mxu0 0.0
      %213 = vmatpush1.msra.mxu0 %v154
      %214 = vmatprep.subr.mxu0 0.0
      %215 = vmatpush1.msra.mxu0 %v155
      %216 = vmatprep.subr.mxu0 0.0
      %217 = vmatpush1.msra.mxu0 %v156
      %218 = vmatprep.subr.mxu0 0.0
      %219 = vmatpush1.msra.mxu0 %v157
      %220 = vmatprep.subr.mxu0 0.0
      %221 = vmatpush1.msra.mxu0 %v158
      %222 = vmatprep.subr.mxu0 0.0
      %223 = vmatpush1.msra.mxu0 %v159
      %224 = vmatprep.subr.mxu0 0.0
      %225 = vmatpush1.msra.mxu0 %v160
      %226 = vmatprep.subr.mxu0 0.0
      %227 = vmatpush1.msra.mxu0 %v161
      %228 = vmatprep.subr.mxu0 0.0
      %229 = vmatpush1.msra.mxu0 %v162
      %230 = vmatprep.subr.mxu0 0.0
      %231 = vmatpush1.msra.mxu0 %v163
      %232 = vmatprep.subr.mxu0 0.0
      %233 = vmatpush1.msra.mxu0 %v164
      %234 = vmatprep.subr.mxu0 0.0
      %235 = vmatpush1.msra.mxu0 %v165
      %236 = vmatprep.subr.mxu0 0.0
      %237 = vmatpush1.msra.mxu0 %v166
      %238 = vmatprep.subr.mxu0 0.0
      %239 = vmatpush1.msra.mxu0 %v167
      %240 = vmatprep.subr.mxu0 0.0
      %241 = vmatpush1.msra.mxu0 %v168
      %242 = vmatprep.subr.mxu0 0.0
      %243 = vmatpush1.msra.mxu0 %v169
      %244 = vmatprep.subr.mxu0 0.0
      %245 = vmatpush1.msra.mxu0 %v170
      %246 = vmatprep.subr.mxu0 0.0
      %247 = vmatpush1.msra.mxu0 %v171
      %248 = vmatprep.subr.mxu0 0.0
      %249 = vmatpush1.msra.mxu0 %v172
      %250 = vmatprep.subr.mxu0 0.0
      %251 = vmatpush1.msra.mxu0 %v173
      %252 = vmatprep.subr.mxu0 0.0
      %253 = vmatpush1.msra.mxu0 %v174
      %254 = vmatprep.subr.mxu0 0.0
      %255 = vmatpush1.msra.mxu0 %v175
      %256 = vmatprep.subr.mxu0 0.0
      %257 = vmatpush1.msra.mxu0 %v176
      %258 = vmatprep.subr.mxu0 0.0
      %259 = vmatpush1.msra.mxu0 %v177
      %260 = vmatprep.mubr.f32.mxu0 %v193
      %261 = vmatmul.mubr.f32.gmra.mrb[0].mxu0 %v192
      %v262 = vpop.f32.mrb[0].mxu0
      %v263 = vadd.f32 %v183, %v262
      %v264 = vpop.f32.mrb[0].mxu0
      %265 = vdwg.mxu0
      %v266 = vmax.f32 %v263, 0.0
      %v267 = vld [vmem:[#allocation8] sm:$0xff]
      %v268 = vld [vmem:[#allocation8 + $0x8] sm:$0xff]
      %v269 = vld [vmem:[#allocation8 + $0x10] sm:$0xff]
      %v270 = vld [vmem:[#allocation8 + $0x18] sm:$0xff]
      %v271 = vld [vmem:[#allocation8 + $0x20] sm:$0xff]
      %v272 = vld [vmem:[#allocation8 + $0x28] sm:$0xff]
      %v273 = vld [vmem:[#allocation8 + $0x30] sm:$0xff]
      %v274 = vld [vmem:[#allocation8 + $0x38] sm:$0xff]
      %v275 = vld [vmem:[#allocation8 + $0x40] sm:$0xff]
      %v276 = vld [vmem:[#allocation8 + $0x48] sm:$0xff]
      %v277 = vld [vmem:[#allocation8 + $0x50] sm:$0xff]
      %v278 = vld [vmem:[#allocation8 + $0x58] sm:$0xff]
      %v279 = vld [vmem:[#allocation8 + $0x60] sm:$0xff]
      %v280 = vld [vmem:[#allocation8 + $0x68] sm:$0xff]
      %v281 = vld [vmem:[#allocation8 + $0x70] sm:$0xff]
      %v282 = vld [vmem:[#allocation8 + $0x78] sm:$0xff]
      %v283 = vld [vmem:[#allocation8 + $0x80] sm:$0xff]
      %v284 = vld [vmem:[#allocation8 + $0x88] sm:$0xff]
      %v285 = vld [vmem:[#allocation8 + $0x90] sm:$0xff]
      %v286 = vld [vmem:[#allocation8 + $0x98] sm:$0xff]
      %v287 = vld [vmem:[#allocation8 + $0xa0] sm:$0xff]
      %v288 = vld [vmem:[#allocation8 + $0xa8] sm:$0xff]
      %v289 = vld [vmem:[#allocation8 + $0xb0] sm:$0xff]
      %v290 = vld [vmem:[#allocation8 + $0xb8] sm:$0xff]
      %v291 = vld [vmem:[#allocation8 + $0xc0] sm:$0xff]
      %v292 = vld [vmem:[#allocation8 + $0xc8] sm:$0xff]
      %v293 = vld [vmem:[#allocation8 + $0xd0] sm:$0xff]
      %v294 = vld [vmem:[#allocation8 + $0xd8] sm:$0xff]
      %v295 = vld [vmem:[#allocation8 + $0xe0] sm:$0xff]
      %v296 = vld [vmem:[#allocation8 + $0xe8] sm:$0xff]
      %v297 = vld [vmem:[#allocation8 + $0xf0] sm:$0xff]
      %v298 = vld [vmem:[#allocation8 + $0xf8] sm:$0xff]
      %v299 = vld [vmem:[%s4] sm:$0x3]
      %v301 = vlaneseq
      %v302 = vshrl.u32 %v301, 7
      %v303 = vsub.s32 0, %v302
      %v304 = vrot.slane %v299, %v303
      %v305 = vlaneseq
      %v306 = vshrl.u32 %v305, 7
      %v307 = vsub.s32 1, %v306
      %v308 = vrot.slane %v299, %v307
      %311 = vmatprep.subr.mxu0 %v268
      %312 = vmatpush1.msra.mxu0 %v267
      %313 = vmatprep.subr.mxu0 %v270
      %314 = vmatpush1.msra.mxu0 %v269
      %315 = vmatprep.subr.mxu0 %v272
      %316 = vmatpush1.msra.mxu0 %v271
      %317 = vmatprep.subr.mxu0 %v274
      %318 = vmatpush1.msra.mxu0 %v273
      %319 = vmatprep.subr.mxu0 %v276
      %320 = vmatpush1.msra.mxu0 %v275
      %321 = vmatprep.subr.mxu0 %v278
      %322 = vmatpush1.msra.mxu0 %v277
      %323 = vmatprep.subr.mxu0 %v280
      %324 = vmatpush1.msra.mxu0 %v279
      %325 = vmatprep.subr.mxu0 %v282
      %326 = vmatpush1.msra.mxu0 %v281
      %327 = vmatprep.subr.mxu0 %v284
      %328 = vmatpush1.msra.mxu0 %v283
      %329 = vmatprep.subr.mxu0 %v286
      %330 = vmatpush1.msra.mxu0 %v285
      %331 = vmatprep.subr.mxu0 %v288
      %332 = vmatpush1.msra.mxu0 %v287
      %333 = vmatprep.subr.mxu0 %v290
      %334 = vmatpush1.msra.mxu0 %v289
      %335 = vmatprep.subr.mxu0 %v292
      %336 = vmatpush1.msra.mxu0 %v291
      %337 = vmatprep.subr.mxu0 %v294
      %338 = vmatpush1.msra.mxu0 %v293
      %339 = vmatprep.subr.mxu0 %v296
      %340 = vmatpush1.msra.mxu0 %v295
      %341 = vmatprep.subr.mxu0 %v298
      %342 = vmatpush1.msra.mxu0 %v297
      %343 = vmatprep.subr.mxu0 0.0
      %344 = vmatpush1.msra.mxu0 0.0
      %345 = vmatprep.subr.mxu0 0.0
      %346 = vmatpush1.msra.mxu0 0.0
      %347 = vmatprep.subr.mxu0 0.0
      %348 = vmatpush1.msra.mxu0 0.0
      %349 = vmatprep.subr.mxu0 0.0
      %350 = vmatpush1.msra.mxu0 0.0
      %351 = vmatprep.subr.mxu0 0.0
      %352 = vmatpush1.msra.mxu0 0.0
      %353 = vmatprep.subr.mxu0 0.0
      %354 = vmatpush1.msra.mxu0 0.0
      %355 = vmatprep.subr.mxu0 0.0
      %356 = vmatpush1.msra.mxu0 0.0
      %357 = vmatprep.subr.mxu0 0.0
      %358 = vmatpush1.msra.mxu0 0.0
      %359 = vmatprep.subr.mxu0 0.0
      %360 = vmatpush1.msra.mxu0 0.0
      %361 = vmatprep.subr.mxu0 0.0
      %362 = vmatpush1.msra.mxu0 0.0
      %363 = vmatprep.subr.mxu0 0.0
      %364 = vmatpush1.msra.mxu0 0.0
      %365 = vmatprep.subr.mxu0 0.0
      %366 = vmatpush1.msra.mxu0 0.0
      %367 = vmatprep.subr.mxu0 0.0
      %368 = vmatpush1.msra.mxu0 0.0
      %369 = vmatprep.subr.mxu0 0.0
      %370 = vmatpush1.msra.mxu0 0.0
      %371 = vmatprep.subr.mxu0 0.0
      %372 = vmatpush1.msra.mxu0 0.0
      %373 = vmatprep.subr.mxu0 0.0
      %374 = vmatpush1.msra.mxu0 0.0
      %375 = vmatprep.mubr.f32.mxu0 0.0
      %376 = vmatmul.mubr.f32.gmra.mrb[0].mxu0 %v266
      %v377 = vpop.f32.mrb[0].mxu0
      %v378 = vadd.f32 %v304, %v377
      %v379 = vpop.f32.mrb[0].mxu0
      %v380 = vadd.f32 %v308, %v379
      %381 = vdwg.mxu0
      %v382 = vxor.u32 %v378, 2147483648
      %v383 = vxor.u32 %v380, 2147483648
      %v384 = vmul.f32 %v382, 1.442695
      %v385 = vpow.pop %v384
      %v386 = vmul.f32 %v383, 1.442695
      %v387 = vpow.pop %v386
      %v388 = vadd.f32 %v385, 1.0
      %v389 = vadd.f32 %v387, 1.0
      %v390 = vrcp.pop %v388
      %v391 = vmul.f32 1.0, %v390
      %v392 = vrcp.pop %v389
      %v393 = vmul.f32 1.0, %v392
      %v396 = vcombine.low %v391, %v393
      %v398 = vunpack.c.l.s4 1983009808
      %v399 = vunpack.c.0.s8 %v398
      %v400 = vlaneseq
      %v401 = vshrl.u32 %v400, 7
      %v402 = vsub.s32 %v399, %v401
      %v403 = vrot.slane %v396, %v402
      %405 = vst [vmem:[#allocation9] sm:$0xf] %v403
    $region41: #{tpu_custom_call.1} parent=1 // pred_fallthru
      _
    // Predicated region
    $region42: #{tpu_custom_call.1} parent=1 // pred_check
      _
    $region43: #{tpu_custom_call.1} parent=1 // pred_check_branch
      %407 = sbr.rel (0) target = $region45
    $region44: #{tpu_custom_call.1} parent=1 // pred_region
      %s409 = ssub.s32 64, 64
      %410 = vsyncadd [#allocation5], %s409
      %s412 = sshll.u32 [#allocation9], 4
      %s413 = int_to_ptr.vmem [resolvable:$true] %s412
      %415 = dma.vmem_to_hbm [thread:$0]  %s413, 64, %s5, [#allocation5]
    $region45: #{tpu_custom_call.1} parent=1 // pred_fallthru
      _
    // Predicated region
    $region46: #{tpu_custom_call.1} parent=1 // pred_check
      _
    $region47: #{tpu_custom_call.1} parent=1 // pred_check_branch
      %417 = sbr.rel (0) target = $region49
    $region48: #{tpu_custom_call.1} parent=1 // pred_region
      %418 = dma.done [#allocation5], 64
    $region49: #{tpu_custom_call.1} parent=1 // pred_fallthru
      _
    %419 = vsyncpa [#allocation4], 1
    %420 = vsyncpa [#allocation7], 1
    %421 = vsyncpa [#allocation5], 1

</llo_original>
